<compile_context>
chip_gen: v6e
topology: v6e:2x2x1
jax: 0.10.0
libtpu: 0.0.40
codegen_flags: <defaults>
</compile_context>

<pallas_src>
import functools

import jax
import jax.numpy as jnp
from jax.experimental import pallas as pl
from jax.experimental.pallas import tpu as pltpu

# 48 MiB: above the scoped defaults (16 MiB v5e / 32 MiB v6e,v7x), below every
# generation's physical VMEM (128 / 128 / 64 MiB).
_VMEM_LIMIT = 48 * 1024 * 1024


# ---------------------------------------------------------------------------
# helpers
# ---------------------------------------------------------------------------
def _round_up(a, b):
    return (a + b - 1) // b * b


def _pick_row_tile(np_rows, target):
    """Largest multiple-of-8 divisor of np_rows that is <= target (np_rows % 8 == 0)."""
    t = max(8, min(np_rows, target - target % 8))
    while np_rows % t:
        t -= 8
    return t


# ---------------------------------------------------------------------------
# kernels
# ---------------------------------------------------------------------------
def _ln_qkv_kernel(x_ref, g_ref, bln_ref, w_ref, b_ref, out_ref, *, eps):
    """LayerNorm(x) @ W_qkv + b_qkv ; row-tiled, weight resident, f32 accumulate."""
    x = x_ref[0].astype(jnp.float32)                          # (TN, D), LN math in f32
    mu = jnp.mean(x, axis=-1, keepdims=True)
    xc = x - mu
    var = jnp.mean(xc * xc, axis=-1, keepdims=True)
    xn = xc * jax.lax.rsqrt(var + eps) * g_ref[...] + bln_ref[...]
    acc = jnp.dot(xn.astype(w_ref.dtype), w_ref[...],         # MXU in compute dtype
                  preferred_element_type=jnp.float32)
    out_ref[0] = (acc + b_ref[...]).astype(out_ref.dtype)


def _attn_proj_kernel(qkv_ref, res_ref, w_ref, b_ref, out_ref, *,
                      n_heads, head_dim, scale, n_valid, approx_recip):
    """Per-batch softmax attention fused with the output projection + residual."""
    n_tok = qkv_ref.shape[1]
    inner = n_heads * head_dim
    # start the accumulator from residual + proj bias (f32 residual stream)
    acc = res_ref[0].astype(jnp.float32) + b_ref[...]         # (N, dim)

    if n_valid < n_tok:                                        # static: mask padded keys
        col = jax.lax.broadcasted_iota(jnp.int32, (1, n_tok), 1)
        key_bias = jnp.where(col < n_valid, 0.0, -1e30).astype(jnp.float32)
    else:
        key_bias = None

    for h in range(n_heads):                                   # static unrolled head loop
        lo = h * head_dim
        q = qkv_ref[0, :, lo:lo + head_dim] * scale            # scale folded into q (N*Hd)
        k = qkv_ref[0, :, inner + lo:inner + lo + head_dim]
        v = qkv_ref[0, :, 2 * inner + lo:2 * inner + lo + head_dim]
        # q @ k^T without materializing a transpose; f32 scores
        s = jax.lax.dot_general(q, k, (((1,), (1,)), ((), ())),
                                preferred_element_type=jnp.float32)
        if key_bias is not None:
            s = s + key_bias
        s = s - jnp.max(s, axis=-1, keepdims=True)
        p = jnp.exp(s)
        r = jnp.sum(p, axis=-1, keepdims=True)
        o = jnp.dot(p.astype(v.dtype), v, preferred_element_type=jnp.float32)
        # normalize the (N, Hd) head output AFTER p@v (N*Hd mults, not N*N divides)
        o = o * pl.reciprocal(r, approx=approx_recip)
        # accumulate this head's slice of the output projection (fused proj)
        acc = acc + jnp.dot(o.astype(w_ref.dtype), w_ref[lo:lo + head_dim, :],
                            preferred_element_type=jnp.float32)
    out_ref[0] = acc.astype(out_ref.dtype)


def _ln_mlp_kernel(x_ref, g_ref, bln_ref, w1_ref, b1_ref, w2_ref, b2_ref, out_ref, *, eps):
    """x + fc2(gelu(fc1(LayerNorm(x)))) fully fused; the hidden act stays in VMEM."""
    x = x_ref[0].astype(jnp.float32)
    mu = jnp.mean(x, axis=-1, keepdims=True)
    xc = x - mu
    var = jnp.mean(xc * xc, axis=-1, keepdims=True)
    xn = xc * jax.lax.rsqrt(var + eps) * g_ref[...] + bln_ref[...]
    h = jnp.dot(xn.astype(w1_ref.dtype), w1_ref[...],
                preferred_element_type=jnp.float32) + b1_ref[...]
    # tanh-approx GELU (torch.nn.GELU default is exact erf; difference ~1e-3)
    h = jax.nn.gelu(h, approximate=True)
    y = jnp.dot(h.astype(w2_ref.dtype), w2_ref[...],
                preferred_element_type=jnp.float32) + b2_ref[...] + x
    out_ref[0] = y.astype(out_ref.dtype)


# ---------------------------------------------------------------------------
# pallas_call wrappers
# ---------------------------------------------------------------------------
def _itemsize(a):
    return jnp.dtype(a.dtype).itemsize


def _ln_qkv(x3, gamma, beta, w, b, *, eps, tn):
    bsz, np_, din = x3.shape
    dout = w.shape[1]
    return pl.pallas_call(
        functools.partial(_ln_qkv_kernel, eps=eps),
        out_shape=jax.ShapeDtypeStruct((bsz, np_, dout), w.dtype),
        grid_spec=pl.GridSpec(
            grid=(bsz, np_ // tn),
            in_specs=[
                pl.BlockSpec((1, tn, din), lambda b, t: (b, t, 0)),   # streamed rows
                pl.BlockSpec((1, din), lambda b, t: (0, 0)),          # resident LN gamma
                pl.BlockSpec((1, din), lambda b, t: (0, 0)),          # resident LN beta
                pl.BlockSpec((din, dout), lambda b, t: (0, 0)),       # resident weight
                pl.BlockSpec((1, dout), lambda b, t: (0, 0)),         # resident bias
            ],
            out_specs=pl.BlockSpec((1, tn, dout), lambda b, t: (b, t, 0)),
        ),
        compiler_params=pltpu.CompilerParams(
            dimension_semantics=("parallel", "parallel"),
            vmem_limit_bytes=_VMEM_LIMIT),
        cost_estimate=pl.CostEstimate(
            flops=int(2 * bsz * np_ * din * dout),
            transcendentals=int(bsz * np_),
            bytes_accessed=int(bsz * np_ * din * _itemsize(x3)
                               + din * dout * _itemsize(w)
                               + bsz * np_ * dout * _itemsize(w))),
    )(x3, gamma, beta, w, b)


def _attn_proj(qkv3, res3, w_proj, b_proj, *, n_heads, head_dim, n_valid, approx_recip):
    bsz, np_, three_inner = qkv3.shape
    inner = n_heads * head_dim
    dim = w_proj.shape[1]
    kern = functools.partial(_attn_proj_kernel, n_heads=n_heads, head_dim=head_dim,
                             scale=head_dim ** -0.5, n_valid=n_valid,
                             approx_recip=approx_recip)
    # TODO(synk): for B=1 on v7x (2 TCs) add a second parallel axis (flash-style
    # q tiling); with B>=2 the batch axis already feeds both cores.
    return pl.pallas_call(
        kern,
        out_shape=jax.ShapeDtypeStruct((bsz, np_, dim), res3.dtype),
        grid_spec=pl.GridSpec(
            grid=(bsz,),
            in_specs=[
                pl.BlockSpec((1, np_, three_inner), lambda b: (b, 0, 0)),  # qkv per batch
                pl.BlockSpec((1, np_, dim), lambda b: (b, 0, 0)),          # residual
                pl.BlockSpec((inner, dim), lambda b: (0, 0)),              # resident w_proj
                pl.BlockSpec((1, dim), lambda b: (0, 0)),                  # resident b_proj
            ],
            out_specs=pl.BlockSpec((1, np_, dim), lambda b: (b, 0, 0)),
        ),
        compiler_params=pltpu.CompilerParams(
            dimension_semantics=("parallel",),
            vmem_limit_bytes=_VMEM_LIMIT),
        cost_estimate=pl.CostEstimate(
            flops=int(4 * bsz * n_heads * np_ * np_ * head_dim
                      + 2 * bsz * np_ * inner * dim),
            transcendentals=int(bsz * n_heads * np_ * np_),
            bytes_accessed=int(bsz * np_ * (three_inner * _itemsize(qkv3)
                                            + 2 * dim * _itemsize(res3))
                               + inner * dim * _itemsize(w_proj))),
    )(qkv3, res3, w_proj, b_proj)


def _ln_mlp(x3, gamma, beta, w1, b1, w2, b2, *, eps, tn):
    bsz, np_, dim = x3.shape
    hid = w1.shape[1]
    return pl.pallas_call(
        functools.partial(_ln_mlp_kernel, eps=eps),
        out_shape=jax.ShapeDtypeStruct((bsz, np_, dim), x3.dtype),
        grid_spec=pl.GridSpec(
            grid=(bsz, np_ // tn),
            in_specs=[
                pl.BlockSpec((1, tn, dim), lambda b, t: (b, t, 0)),   # streamed rows (+residual)
                pl.BlockSpec((1, dim), lambda b, t: (0, 0)),          # resident LN gamma
                pl.BlockSpec((1, dim), lambda b, t: (0, 0)),          # resident LN beta
                pl.BlockSpec((dim, hid), lambda b, t: (0, 0)),        # resident w_fc1
                pl.BlockSpec((1, hid), lambda b, t: (0, 0)),          # resident b_fc1
                pl.BlockSpec((hid, dim), lambda b, t: (0, 0)),        # resident w_fc2
                pl.BlockSpec((1, dim), lambda b, t: (0, 0)),          # resident b_fc2
            ],
            out_specs=pl.BlockSpec((1, tn, dim), lambda b, t: (b, t, 0)),
        ),
        compiler_params=pltpu.CompilerParams(
            dimension_semantics=("parallel", "parallel"),
            vmem_limit_bytes=_VMEM_LIMIT),
        cost_estimate=pl.CostEstimate(
            flops=int(4 * bsz * np_ * dim * hid),
            transcendentals=int(bsz * np_ * hid),
            bytes_accessed=int(2 * bsz * np_ * dim * _itemsize(x3)
                               + 2 * dim * hid * _itemsize(w1))),
    )(x3, gamma, beta, w1, b1, w2, b2)


# ---------------------------------------------------------------------------
# EncoderBlock forward
# ---------------------------------------------------------------------------
def encoder_block(x, params, *, n_heads, head_dim, eps=1e-5,
                  compute_dtype=None, tn_target=512):
    """x: (B, N, tran_dim). Weights stored as (in, out) = torch weight.T.

    compute_dtype=jnp.bfloat16 feeds the MXU in bf16 (weights + matmul inputs);
    LN / softmax math, biases, accumulation and the residual stream stay f32.
    tn_target: row-tile target (512 good on v5e/v6e's 128 MiB; keep <=384 or use
    bf16 under v7x's 64 MiB).
    """
    orig_dtype = x.dtype
    bsz, seq, dim = x.shape
    inner = n_heads * head_dim
    assert params["w_proj"].shape[0] == inner
    cdt = jnp.dtype(compute_dtype) if compute_dtype is not None else jnp.dtype(orig_dtype)

    # single pad of the token dim (only when N % 8 != 0); padded keys are masked
    # inside attention; one slice at the very end.
    np_ = _round_up(seq, 8)
    if np_ != seq:
        x = jnp.pad(x, ((0, 0), (0, np_ - seq), (0, 0)))
    tn = _pick_row_tile(np_, tn_target)

    f32 = jnp.float32
    g1 = params["ln1_g"].reshape(1, dim).astype(f32)
    bt1 = params["ln1_b"].reshape(1, dim).astype(f32)
    g2 = params["ln2_g"].reshape(1, dim).astype(f32)
    bt2 = params["ln2_b"].reshape(1, dim).astype(f32)
    b_qkv = params["b_qkv"].reshape(1, 3 * inner).astype(f32)
    b_proj = params["b_proj"].reshape(1, dim).astype(f32)
    b_fc1 = params["b_fc1"].reshape(1, -1).astype(f32)
    b_fc2 = params["b_fc2"].reshape(1, dim).astype(f32)
    w_qkv = params["w_qkv"].astype(cdt)
    w_proj = params["w_proj"].astype(cdt)
    w_fc1 = params["w_fc1"].astype(cdt)
    w_fc2 = params["w_fc2"].astype(cdt)

    approx_recip = cdt != jnp.float32     # exact 1/x when pure-f32 math is requested

    # --- attention branch: x = x + proj(attn(norm1(x))) ---
    qkv = _ln_qkv(x, g1, bt1, w_qkv, b_qkv, eps=eps, tn=tn)            # (B, Np, 3*inner)
    x = _attn_proj(qkv, x, w_proj, b_proj, n_heads=n_heads, head_dim=head_dim,
                   n_valid=seq, approx_recip=approx_recip)             # (B, Np, dim)

    # --- MLP branch: x = x + fc2(gelu(fc1(norm2(x)))) ---
    x = _ln_mlp(x, g2, bt2, w_fc1, b_fc1, w_fc2, b_fc2, eps=eps, tn=tn)

    if np_ != seq:
        x = x[:, :seq, :]
    return x.astype(orig_dtype)


# ---------------------------------------------------------------------------
# pure-JAX reference (same math as the PyTorch module, dropout=0)
# ---------------------------------------------------------------------------
def encoder_block_ref(x, params, *, n_heads, head_dim, eps=1e-5):
    def ln(t, g, b):
        mu = jnp.mean(t, axis=-1, keepdims=True)
        var = jnp.mean((t - mu) ** 2, axis=-1, keepdims=True)
        return (t - mu) * jax.lax.rsqrt(var + eps) * g + b

    batch, seq, _ = x.shape
    inner = n_heads * head_dim

    h = ln(x, params["ln1_g"], params["ln1_b"])
    qkv = h @ params["w_qkv"] + params["b_qkv"]
    q, k, v = jnp.split(qkv, 3, axis=-1)
    split_heads = lambda t: t.reshape(batch, seq, n_heads, head_dim).transpose(0, 2, 1, 3)
    q, k, v = map(split_heads, (q, k, v))
    s = jnp.einsum("bhnd,bhmd->bhnm", q, k) * (head_dim ** -0.5)
    p = jax.nn.softmax(s, axis=-1)
    o = jnp.einsum("bhnm,bhmd->bhnd", p, v)
    o = o.transpose(0, 2, 1, 3).reshape(batch, seq, inner)
    x = x + o @ params["w_proj"] + params["b_proj"]

    h = ln(x, params["ln2_g"], params["ln2_b"])
    h = jax.nn.gelu(h @ params["w_fc1"] + params["b_fc1"], approximate=True)
    return x + h @ params["w_fc2"] + params["b_fc2"]


if __name__ == "__main__":
    # Small shapes consistent with EncoderBlock:
    # batch=2, seq=8, tran_dim=32, n_heads=2, head_dim=16 (inner=32), mlp_dim=64.
    B, N = 2, 8
    tran_dim, n_heads, head_dim, mlp_dim = 32, 2, 16, 64
    inner = n_heads * head_dim

    key = jax.random.PRNGKey(0)
    ks = jax.random.split(key, 12)
    x = jax.random.normal(ks[0], (B, N, tran_dim), dtype=jnp.float32)
    params = dict(
        ln1_g=1.0 + 0.1 * jax.random.normal(ks[1], (tran_dim,), jnp.float32),
        ln1_b=0.1 * jax.random.normal(ks[2], (tran_dim,), jnp.float32),
        w_qkv=0.1 * jax.random.normal(ks[3], (tran_dim, 3 * inner), jnp.float32),
        b_qkv=0.05 * jax.random.normal(ks[4], (3 * inner,), jnp.float32),
        w_proj=0.1 * jax.random.normal(ks[5], (inner, tran_dim), jnp.float32),
        b_proj=0.05 * jax.random.normal(ks[6], (tran_dim,), jnp.float32),
        ln2_g=1.0 + 0.1 * jax.random.normal(ks[7], (tran_dim,), jnp.float32),
        ln2_b=0.1 * jax.random.normal(ks[8], (tran_dim,), jnp.float32),
        w_fc1=0.1 * jax.random.normal(ks[9], (tran_dim, mlp_dim), jnp.float32),
        b_fc1=0.05 * jax.random.normal(ks[10], (mlp_dim,), jnp.float32),
        w_fc2=0.1 * jax.random.normal(ks[11], (mlp_dim, tran_dim), jnp.float32),
        b_fc2=jnp.zeros((tran_dim,), jnp.float32),
    )

    # main check (N multiple of 8, no padding path)
    out = encoder_block(x, params, n_heads=n_heads, head_dim=head_dim)
    out = jax.block_until_ready(out)
    ref = encoder_block_ref(x, params, n_heads=n_heads, head_dim=head_dim)
    assert out.shape == x.shape
    max_err = float(jnp.max(jnp.abs(out - ref)))
    assert jnp.allclose(out, ref, atol=1e-3, rtol=1e-3), f"max_err={max_err}"

    # also exercise the padded + masked attention path (ViT-style N % 8 != 0)
    x_odd = x[:, :6, :]
    out_odd = jax.block_until_ready(
        encoder_block(x_odd, params, n_heads=n_heads, head_dim=head_dim))
    ref_odd = encoder_block_ref(x_odd, params, n_heads=n_heads, head_dim=head_dim)
    max_err_odd = float(jnp.max(jnp.abs(out_odd - ref_odd)))
    assert jnp.allclose(out_odd, ref_odd, atol=1e-3, rtol=1e-3), f"max_err={max_err_odd}"

    print("KERNEL_OK")
</pallas_src>

<mosaic_0001>
module attributes {stable_mosaic.version = 11 : i64} {
  func.func @_ln_qkv_kernel(%arg0: i32, %arg1: i32, %arg2: memref<1x8x32xf32, #tpu.memory_space<vmem>>, %arg3: memref<1x32xf32, #tpu.memory_space<vmem>>, %arg4: memref<1x32xf32, #tpu.memory_space<vmem>>, %arg5: memref<32x96xf32, #tpu.memory_space<vmem>>, %arg6: memref<1x96xf32, #tpu.memory_space<vmem>>, %arg7: memref<1x8x96xf32, #tpu.memory_space<vmem>>) attributes {dimension_semantics = [#tpu.dimension_semantics<parallel>, #tpu.dimension_semantics<parallel>], iteration_bounds = array<i64: 2, 1>, scalar_prefetch = 0 : i64, scratch_operands = 0 : i64, tpu.core_type = #tpu.core_type<tc>, window_params = [{transform_indices = @transform_0, window_bounds = array<i64: 1, 8, 32>}, {pipeline_mode = #tpu.pipeline_mode<synchronous>, transform_indices = @transform_1, window_bounds = array<i64: 1, 32>}, {pipeline_mode = #tpu.pipeline_mode<synchronous>, transform_indices = @transform_2, window_bounds = array<i64: 1, 32>}, {pipeline_mode = #tpu.pipeline_mode<synchronous>, transform_indices = @transform_3, window_bounds = array<i64: 32, 96>}, {pipeline_mode = #tpu.pipeline_mode<synchronous>, transform_indices = @transform_4, window_bounds = array<i64: 1, 96>}, {transform_indices = @transform_5, window_bounds = array<i64: 1, 8, 96>}]} {
    %c0 = arith.constant 0 : index
    %c0_0 = arith.constant 0 : index
    %c0_1 = arith.constant 0 : index
    %0 = vector.load %arg2[%c0, %c0_0, %c0_1] : memref<1x8x32xf32, #tpu.memory_space<vmem>>, vector<1x8x32xf32>
    %1 = vector.shape_cast %0 : vector<1x8x32xf32> to vector<8x32xf32>
    %cst = arith.constant dense<0.000000e+00> : vector<8xf32>
    %2 = vector.multi_reduction <add>, %1, %cst [1] : vector<8x32xf32> to vector<8xf32>
    %3 = vector.shape_cast %2 : vector<8xf32> to vector<8x1xf32>
    %cst_2 = arith.constant 3.200000e+01 : f32
    %4 = vector.broadcast %cst_2 : f32 to vector<8x1xf32>
    %5 = arith.divf %3, %4 : vector<8x1xf32>
    %6 = vector.broadcast %5 : vector<8x1xf32> to vector<8x32xf32>
    %7 = arith.subf %1, %6 : vector<8x32xf32>
    %8 = arith.mulf %7, %7 : vector<8x32xf32>
    %cst_3 = arith.constant dense<0.000000e+00> : vector<8xf32>
    %9 = vector.multi_reduction <add>, %8, %cst_3 [1] : vector<8x32xf32> to vector<8xf32>
    %10 = vector.shape_cast %9 : vector<8xf32> to vector<8x1xf32>
    %cst_4 = arith.constant 3.200000e+01 : f32
    %11 = vector.broadcast %cst_4 : f32 to vector<8x1xf32>
    %12 = arith.divf %10, %11 : vector<8x1xf32>
    %cst_5 = arith.constant 9.99999974E-6 : f32
    %13 = vector.broadcast %cst_5 : f32 to vector<8x1xf32>
    %14 = arith.addf %12, %13 : vector<8x1xf32>
    %15 = math.rsqrt %14 : vector<8x1xf32>
    %16 = vector.broadcast %15 : vector<8x1xf32> to vector<8x32xf32>
    %17 = arith.mulf %7, %16 : vector<8x32xf32>
    %c0_6 = arith.constant 0 : index
    %c0_7 = arith.constant 0 : index
    %18 = vector.load %arg3[%c0_6, %c0_7] : memref<1x32xf32, #tpu.memory_space<vmem>>, vector<1x32xf32>
    %19 = vector.broadcast %18 : vector<1x32xf32> to vector<8x32xf32>
    %20 = arith.mulf %17, %19 : vector<8x32xf32>
    %c0_8 = arith.constant 0 : index
    %c0_9 = arith.constant 0 : index
    %21 = vector.load %arg4[%c0_8, %c0_9] : memref<1x32xf32, #tpu.memory_space<vmem>>, vector<1x32xf32>
    %22 = vector.broadcast %21 : vector<1x32xf32> to vector<8x32xf32>
    %23 = arith.addf %20, %22 : vector<8x32xf32>
    %c0_10 = arith.constant 0 : index
    %c0_11 = arith.constant 0 : index
    %24 = vector.load %arg5[%c0_10, %c0_11] : memref<32x96xf32, #tpu.memory_space<vmem>>, vector<32x96xf32>
    %cst_12 = arith.constant dense<0.000000e+00> : vector<8x96xf32>
    %25 = tpu.matmul %23, %24, %cst_12 {dimension_numbers = #tpu.dot_dimension_numbers<[1], [0], [0], [1], [0, 0, 1, 1], [], []>} : vector<8x32xf32>, vector<32x96xf32>, vector<8x96xf32> -> vector<8x96xf32>
    %c0_13 = arith.constant 0 : index
    %c0_14 = arith.constant 0 : index
    %26 = vector.load %arg6[%c0_13, %c0_14] : memref<1x96xf32, #tpu.memory_space<vmem>>, vector<1x96xf32>
    %27 = vector.broadcast %26 : vector<1x96xf32> to vector<8x96xf32>
    %28 = arith.addf %25, %27 : vector<8x96xf32>
    %c0_15 = arith.constant 0 : index
    %c0_16 = arith.constant 0 : index
    %c0_17 = arith.constant 0 : index
    %29 = vector.load %arg7[%c0_15, %c0_16, %c0_17] : memref<1x8x96xf32, #tpu.memory_space<vmem>>, vector<1x8x96xf32>
    %30 = vector.shape_cast %29 : vector<1x8x96xf32> to vector<8x96xf32>
    %31 = vector.shape_cast %28 : vector<8x96xf32> to vector<1x8x96xf32>
    tpu.vector_store %arg7[%c0_15, %c0_16, %c0_17], %31 {strides = array<i32>} : memref<1x8x96xf32, #tpu.memory_space<vmem>>, vector<1x8x96xf32>,
    return
  }
  func.func @transform_0(%arg0: i32, %arg1: i32) -> (i32, i32, i32) {
    %c0_i32 = arith.constant 0 : i32
    %c0_i32_0 = arith.constant 0 : i32
    return %arg0, %arg1, %c0_i32 : i32, i32, i32
  }
  func.func @transform_1(%arg0: i32, %arg1: i32) -> (i32, i32) {
    %c0_i32 = arith.constant 0 : i32
    %c0_i32_0 = arith.constant 0 : i32
    %c0_i32_1 = arith.constant 0 : i32
    return %c0_i32, %c0_i32_0 : i32, i32
  }
  func.func @transform_2(%arg0: i32, %arg1: i32) -> (i32, i32) {
    %c0_i32 = arith.constant 0 : i32
    %c0_i32_0 = arith.constant 0 : i32
    %c0_i32_1 = arith.constant 0 : i32
    return %c0_i32, %c0_i32_0 : i32, i32
  }
  func.func @transform_3(%arg0: i32, %arg1: i32) -> (i32, i32) {
    %c0_i32 = arith.constant 0 : i32
    %c0_i32_0 = arith.constant 0 : i32
    %c0_i32_1 = arith.constant 0 : i32
    return %c0_i32, %c0_i32_0 : i32, i32
  }
  func.func @transform_4(%arg0: i32, %arg1: i32) -> (i32, i32) {
    %c0_i32 = arith.constant 0 : i32
    %c0_i32_0 = arith.constant 0 : i32
    %c0_i32_1 = arith.constant 0 : i32
    return %c0_i32, %c0_i32_0 : i32, i32
  }
  func.func @transform_5(%arg0: i32, %arg1: i32) -> (i32, i32, i32) {
    %c0_i32 = arith.constant 0 : i32
    %c0_i32_0 = arith.constant 0 : i32
    return %arg0, %arg1, %c0_i32 : i32, i32, i32
  }
}

</mosaic_0001>

<llo_original>
// kernel: tpu_custom_call.1
$region0: #{tpu_custom_call.1}
  #allocation0 [shape = 'u32[]', space=smem, size = 0x4, offset = 0x4, fixed_abs, tag = 'smem constant byte address 0x4 - core index']
  #allocation1 [shape = 'u32[144,128]{1,0:T(1,128)}', space=vmem, size = 0x12000, scoped, tag = 'internal scratch']
  %s0 = inlined_call_operand.hbm [shape: f32[2,8,32], index: 0, kind: input, shape index: {}]
  %s1 = inlined_call_operand.vmem [shape: f32[1,32], index: 1, kind: input, shape index: {}]
  %s2 = inlined_call_operand.vmem [shape: f32[1,32], index: 2, kind: input, shape index: {}]
  %s3 = inlined_call_operand.hbm [shape: f32[32,96], index: 3, kind: input, shape index: {}]
  %s4 = inlined_call_operand.vmem [shape: f32[1,96], index: 4, kind: input, shape index: {}]
  %s5 = inlined_call_operand.hbm [shape: f32[2,8,96], index: 5, kind: output, shape index: {}]
  %s6 = sld [smem:[#allocation0]]
  $region61: #{tpu_custom_call.1} parent=0
    _
  %s8 = ssub.s32 1, %s6
  %s9 = scalar_select 0, %s8, %s6
  $region1: #{tpu_custom_call.1} parent=0
    #allocation2 [shape = 'u8[8192]{0}', space=vmem, size = 0x2000, scoped, tag = 'input window, operand 0']
    #allocation3 [shape = 's32[2]{0}', space=sflag, size = 0x8, scoped, tag = 'scoped memory for tpu_custom_call.1']
    #allocation4 [shape = 's32[2]{0}', space=sflag, size = 0x8, scoped, tag = 'scoped memory for tpu_custom_call.1']
    #allocation5 [shape = 'u8[16384]{0}', space=vmem, size = 0x4000, scoped, tag = 'input window, operand 3, single buffered']
    #allocation6 [shape = 's32[1]{0}', space=sflag, size = 0x4, scoped, tag = 'scoped memory for tpu_custom_call.1']
    #allocation7 [shape = 'u8[8192]{0}', space=vmem, size = 0x2000, scoped, tag = 'output window, operand 0']
    %10 = vsyncpa [#allocation3], 0
    %s11 = scalar_lea.sflag [#allocation3], 1
    %12 = vsyncpa %s11, 0
    %13 = vsyncpa [#allocation6], 0
    %14 = vsyncpa [#allocation4], 0
    %s15 = scalar_lea.sflag [#allocation4], 1
    %16 = vsyncpa %s15, 0
    loop: start=0, step=1, limit=4
    $region2: #{tpu_custom_call.1} parent=1 // loop_pre_header
      _
    $region3: #{tpu_custom_call.1} parent=1 // loop_header
      %s18 = sphi 0, %s22
      %p19 = scmp.ge.s32.totalorder %s18, 4
      %s25 = sphi 0, %s37
      %s26 = sphi 0, %s33
      %s27 = sphi 0, %s25
      %s28 = sphi 0, %s26
      %s29 = sphi 0, %s27
      %s30 = sphi 0, %s28
      %s42 = sphi 0, %s44
      %s45 = sphi 0, %s42
      %s46 = sphi 0, %s45
      %s62 = sphi 0, %s46
      %s66 = sphi 0, %s66
      %s68 = sphi 0, %s66
      %s69 = sphi 0, %s68
      %s83 = sphi 0, %s69
      %s87 = sphi 0, %s87
      %s89 = sphi 0, %s87
      %s90 = sphi 0, %s89
      %s104 = sphi 0, %s90
      %s108 = sphi 0, %s108
      %s110 = sphi 0, %s108
      %s111 = sphi 0, %s110
      %s125 = sphi 0, %s111
      %s129 = sphi 0, %s129
      %s131 = sphi 0, %s129
      %s132 = sphi 0, %s131
      %s146 = sphi 0, %s132
      %s154 = sphi 0, %s156
      %s157 = sphi 0, %s154
      %s158 = sphi 0, %s157
      %s174 = sphi 0, %s158
    $region4: #{tpu_custom_call.1} parent=1 // loop_header_branch
      %21 = sbr.rel (%p19) target = $region8
    $region5: #{tpu_custom_call.1} parent=1 // loop_body
      %s23 = ssub.s32 %s18, 1
      %s24 = ssub.s32 %s18, 2
      %s31 = sadd.s32 1, %s26
      %p32 = scmp.ge.s32.totalorder %s31, 1
      %s33 = scalar_select %p32, 0, %s31
      %s34 = sadd.s32 1, %s25
      %s35 = scalar_select %p32, %s34, %s25
      %p36 = scmp.ge.s32.totalorder %s35, 2
      %s37 = scalar_select %p36, 0, %s35
      %s38 = ssub.s32 %s25, %s37
      %s39 = ssub.s32 %s26, %s33
      %s40 = sor.u32 %s38, %s39
      %p41 = scmp.eq.s32.totalorder %s40, 0
      %s43 = sadd.s32 %s42, 1
      %s44 = scalar_select %p41, %s42, %s43
      %p47 = pneg %p41
      %p48 = scmp.eq.s32.totalorder %s18, 1
      %p49 = por %p47, %p48
      %p50 = scmp.ne.s32.totalorder %s42, %s45
      %p51 = scmp.eq.s32.totalorder %s18, 0
      %p52 = por %p50, %p51
      %p53 = scmp.ne.s32.totalorder %s42, %s45
      %p54 = scmp.eq.s32.totalorder %s23, 1
      %p55 = por %p53, %p54
      %p56 = scmp.ne.s32.totalorder %s45, %s46
      %p57 = scmp.eq.s32.totalorder %s23, 0
      %p58 = por %p56, %p57
      %p59 = scmp.ne.s32.totalorder %s45, %s46
      %p60 = scmp.eq.s32.totalorder %s24, 1
      %p61 = por %p59, %p60
      %p63 = scmp.ne.s32.totalorder %s46, %s62
      %p64 = scmp.eq.s32.totalorder %s24, 0
      %p65 = por %p63, %p64
      %s67 = sadd.s32 %s66, 1
      %p70 = scmp.eq.s32.totalorder %s18, 1
      %p71 = scmp.ne.s32.totalorder %s66, %s68
      %p72 = scmp.eq.s32.totalorder %s18, 0
      %p73 = por %p71, %p72
      %p74 = scmp.ne.s32.totalorder %s66, %s68
      %p75 = scmp.eq.s32.totalorder %s23, 1
      %p76 = por %p74, %p75
      %p77 = scmp.ne.s32.totalorder %s68, %s69
      %p78 = scmp.eq.s32.totalorder %s23, 0
      %p79 = por %p77, %p78
      %p80 = scmp.ne.s32.totalorder %s68, %s69
      %p81 = scmp.eq.s32.totalorder %s24, 1
      %p82 = por %p80, %p81
      %p84 = scmp.ne.s32.totalorder %s69, %s83
      %p85 = scmp.eq.s32.totalorder %s24, 0
      %p86 = por %p84, %p85
      %s88 = sadd.s32 %s87, 1
      %p91 = scmp.eq.s32.totalorder %s18, 1
      %p92 = scmp.ne.s32.totalorder %s87, %s89
      %p93 = scmp.eq.s32.totalorder %s18, 0
      %p94 = por %p92, %p93
      %p95 = scmp.ne.s32.totalorder %s87, %s89
      %p96 = scmp.eq.s32.totalorder %s23, 1
      %p97 = por %p95, %p96
      %p98 = scmp.ne.s32.totalorder %s89, %s90
      %p99 = scmp.eq.s32.totalorder %s23, 0
      %p100 = por %p98, %p99
      %p101 = scmp.ne.s32.totalorder %s89, %s90
      %p102 = scmp.eq.s32.totalorder %s24, 1
      %p103 = por %p101, %p102
      %p105 = scmp.ne.s32.totalorder %s90, %s104
      %p106 = scmp.eq.s32.totalorder %s24, 0
      %p107 = por %p105, %p106
      %s109 = sadd.s32 %s108, 1
      %p112 = scmp.eq.s32.totalorder %s18, 1
      %p113 = scmp.ne.s32.totalorder %s108, %s110
      %p114 = scmp.eq.s32.totalorder %s18, 0
      %p115 = por %p113, %p114
      %p116 = scmp.ne.s32.totalorder %s108, %s110
      %p117 = scmp.eq.s32.totalorder %s23, 1
      %p118 = por %p116, %p117
      %p119 = scmp.ne.s32.totalorder %s110, %s111
      %p120 = scmp.eq.s32.totalorder %s23, 0
      %p121 = por %p119, %p120
      %p122 = scmp.ne.s32.totalorder %s110, %s111
      %p123 = scmp.eq.s32.totalorder %s24, 1
      %p124 = por %p122, %p123
      %p126 = scmp.ne.s32.totalorder %s111, %s125
      %p127 = scmp.eq.s32.totalorder %s24, 0
      %p128 = por %p126, %p127
      %s130 = sadd.s32 %s129, 1
      %p133 = scmp.eq.s32.totalorder %s18, 1
      %p134 = scmp.ne.s32.totalorder %s129, %s131
      %p135 = scmp.eq.s32.totalorder %s18, 0
      %p136 = por %p134, %p135
      %p137 = scmp.ne.s32.totalorder %s129, %s131
      %p138 = scmp.eq.s32.totalorder %s23, 1
      %p139 = por %p137, %p138
      %p140 = scmp.ne.s32.totalorder %s131, %s132
      %p141 = scmp.eq.s32.totalorder %s23, 0
      %p142 = por %p140, %p141
      %p143 = scmp.ne.s32.totalorder %s131, %s132
      %p144 = scmp.eq.s32.totalorder %s24, 1
      %p145 = por %p143, %p144
      %p147 = scmp.ne.s32.totalorder %s132, %s146
      %p148 = scmp.eq.s32.totalorder %s24, 0
      %p149 = por %p147, %p148
      %s150 = ssub.s32 %s25, %s37
      %s151 = ssub.s32 %s26, %s33
      %s152 = sor.u32 %s150, %s151
      %p153 = scmp.eq.s32.totalorder %s152, 0
      %s155 = sadd.s32 %s154, 1
      %s156 = scalar_select %p153, %s154, %s155
      %p159 = pneg %p153
      %p160 = scmp.eq.s32.totalorder %s18, 1
      %p161 = por %p159, %p160
      %p162 = scmp.ne.s32.totalorder %s154, %s157
      %p163 = scmp.eq.s32.totalorder %s18, 0
      %p164 = por %p162, %p163
      %p165 = scmp.ne.s32.totalorder %s154, %s157
      %p166 = scmp.eq.s32.totalorder %s23, 1
      %p167 = por %p165, %p166
      %p168 = scmp.ne.s32.totalorder %s157, %s158
      %p169 = scmp.eq.s32.totalorder %s23, 0
      %p170 = por %p168, %p169
      %p171 = scmp.ne.s32.totalorder %s157, %s158
      %p172 = scmp.eq.s32.totalorder %s24, 1
      %p173 = por %p171, %p172
      %p175 = scmp.ne.s32.totalorder %s158, %s174
      %p176 = scmp.eq.s32.totalorder %s24, 0
      %p177 = por %p175, %p176
      %p178 = scmp.le.s32.totalorder 1, %s18
      %p179 = scmp.lt.s32.totalorder %s18, 3
      %p180 = pnand %p178, %p179
      %p181 = pneg %p180
      // Predicated region
      $region9: #{tpu_custom_call.1} parent=5 // pred_check
        _
      $region10: #{tpu_custom_call.1} parent=5 // pred_check_branch
        %183 = sbr.rel (%p180) target = $region12
      $region11: #{tpu_custom_call.1} parent=5 // pred_region
        %s184 = ssub.s32 %s18, 1
        // Predicated region
        $region13: #{tpu_custom_call.1} parent=11 // pred_check
          %p185 = pneg %p79
        $region14: #{tpu_custom_call.1} parent=11 // pred_check_branch
          %187 = sbr.rel (%p185) target = $region16
        $region15: #{tpu_custom_call.1} parent=11 // pred_region
          _
        $region16: #{tpu_custom_call.1} parent=11 // pred_fallthru
          _
        // Predicated region
        $region17: #{tpu_custom_call.1} parent=11 // pred_check
          %p188 = pneg %p100
        $region18: #{tpu_custom_call.1} parent=11 // pred_check_branch
          %190 = sbr.rel (%p188) target = $region20
        $region19: #{tpu_custom_call.1} parent=11 // pred_region
          _
        $region20: #{tpu_custom_call.1} parent=11 // pred_fallthru
          _
        // Predicated region
        $region21: #{tpu_custom_call.1} parent=11 // pred_check
          %p191 = pneg %p121
        $region22: #{tpu_custom_call.1} parent=11 // pred_check_branch
          %193 = sbr.rel (%p191) target = $region24
        $region23: #{tpu_custom_call.1} parent=11 // pred_region
          %s195 = ssub.s32 512, 512
          %196 = vsyncadd [#allocation6], %s195
          %s197 = sshll.u32 [#allocation5], 4
          %s198 = int_to_ptr.vmem [resolvable:$true] %s197
          %203 = dma.hbm_to_vmem [thread:$0]  %s3, 512, %s198, [#allocation6], 128, 128, 8
        $region24: #{tpu_custom_call.1} parent=11 // pred_fallthru
          _
        // Predicated region
        $region25: #{tpu_custom_call.1} parent=11 // pred_check
          %p204 = pneg %p142
        $region26: #{tpu_custom_call.1} parent=11 // pred_check_branch
          %206 = sbr.rel (%p204) target = $region28
        $region27: #{tpu_custom_call.1} parent=11 // pred_region
          _
        $region28: #{tpu_custom_call.1} parent=11 // pred_fallthru
          _
      $region12: #{tpu_custom_call.1} parent=5 // pred_fallthru
        _
      %p207 = scmp.lt.s32.totalorder %s18, 2
      // Predicated region
      $region29: #{tpu_custom_call.1} parent=5 // pred_check
        %p208 = pneg %p207
      $region30: #{tpu_custom_call.1} parent=5 // pred_check_branch
        %210 = sbr.rel (%p208) target = $region32
      $region31: #{tpu_custom_call.1} parent=5 // pred_region
        // Predicated region
        $region33: #{tpu_custom_call.1} parent=31 // pred_check
          %p211 = pneg %p52
        $region34: #{tpu_custom_call.1} parent=31 // pred_check_branch
          %213 = sbr.rel (%p211) target = $region36
        $region35: #{tpu_custom_call.1} parent=31 // pred_region
          %s214 = sand.u32 %s42, 1
          %s215 = scalar_lea.sflag [#allocation3], %s214
          %s216 = sand.u32 %s42, 1
          %s217 = smul.addr %s216, 8
          %s218 = scalar_lea.vmem [#allocation2], %s217
          %s220 = ssub.s32 128, 128
          %221 = vsyncadd %s215, %s220
          %s222 = sadd.s32 %s26, %s25
          %s223 = smul.addr %s222, 128
          %s224 = scalar_lea.hbm %s0, %s223
          %s226 = sshll.u32 %s218, 4
          %s227 = int_to_ptr.vmem [resolvable:$true] %s226
          %229 = dma.hbm_to_vmem [thread:$0]  %s224, 128, %s227, %s215
        $region36: #{tpu_custom_call.1} parent=31 // pred_fallthru
          _
      $region32: #{tpu_custom_call.1} parent=5 // pred_fallthru
        _
      %p230 = scmp.le.s32.totalorder 1, %s18
      %p231 = scmp.lt.s32.totalorder %s18, 3
      %p232 = pnand %p230, %p231
      %p233 = pneg %p232
      // Predicated region
      $region37: #{tpu_custom_call.1} parent=5 // pred_check
        _
      $region38: #{tpu_custom_call.1} parent=5 // pred_check_branch
        %235 = sbr.rel (%p232) target = $region40
      $region39: #{tpu_custom_call.1} parent=5 // pred_region
        %s236 = ssub.s32 %s18, 1
        %s237 = sand.u32 %s45, 1
        %s238 = scalar_lea.sflag [#allocation3], %s237
        %s239 = sand.u32 %s45, 1
        %s240 = smul.addr %s239, 8
        %s241 = scalar_lea.vmem [#allocation2], %s240
        // Predicated region
        $region41: #{tpu_custom_call.1} parent=39 // pred_check
          %p242 = pneg %p58
        $region42: #{tpu_custom_call.1} parent=39 // pred_check_branch
          %244 = sbr.rel (%p242) target = $region44
        $region43: #{tpu_custom_call.1} parent=39 // pred_region
          %245 = dma.done %s238, 128
        $region44: #{tpu_custom_call.1} parent=39 // pred_fallthru
          _
        // Predicated region
        $region45: #{tpu_custom_call.1} parent=39 // pred_check
          %p246 = pneg %p121
        $region46: #{tpu_custom_call.1} parent=39 // pred_check_branch
          %248 = sbr.rel (%p246) target = $region48
        $region47: #{tpu_custom_call.1} parent=39 // pred_region
          %249 = dma.done [#allocation6], 512
        $region48: #{tpu_custom_call.1} parent=39 // pred_fallthru
          _
        %s250 = sand.u32 %s45, 1
        %s251 = scalar_lea.sflag [#allocation3], %s250
        %s252 = sand.u32 %s45, 1
        %s253 = smul.addr %s252, 8
        %s254 = scalar_lea.vmem [#allocation2], %s253
        %p255 = pneg %p58
        %p256 = pneg %p55
        %p257 = pneg %p79
        %p258 = pneg %p76
        %p259 = pneg %p100
        %p260 = pneg %p97
        %p261 = pneg %p121
        %p262 = pneg %p118
        %p263 = pneg %p142
        %p264 = pneg %p139
        %p265 = pneg %p170
        %p266 = pneg %p167
        %s267 = sand.u32 %s157, 1
        %s268 = scalar_lea.sflag [#allocation4], %s267
        %s269 = sand.u32 %s157, 1
        %s270 = smul.addr %s269, 8
        %s271 = scalar_lea.vmem [#allocation7], %s270
        %v272 = vld [vmem:[%s241] sm:$0xff]
        %vm273 = vcmask 261120
        %v274 = vsel %vm273, %v272, 0.0
        %275 = vadd.xlane.f32.xlu0 %v274
        %v276 = vpop.xlane.xlu0 %275
        %v277 = vrcp.pop 32.0
        %v278 = vmul.f32 %v276, %v277
        %v279 = vsub.f32 %v272, %v278
        %v280 = vmul.f32 %v279, %v279
        %v281 = vsel %vm273, %v280, 0.0
        %282 = vadd.xlane.f32.xlu0 %v281
        %v283 = vpop.xlane.xlu0 %282
        %v284 = vmul.f32 %v283, %v277
        %v285 = vadd.f32 %v284, 1e-05
        %v286 = vrsqrt.pop %v285
        %v287 = vmul.f32 %v279, %v286
        %v288 = vld [vmem:[%s1] sm:$0x1]
        %v290 = vlaneseq
        %v291 = vshrl.u32 %v290, 7
        %v292 = vsub.s32 0, %v291
        %v293 = vrot.slane %v288, %v292
        %v295 = vmul.f32 %v287, %v293
        %v296 = vld [vmem:[%s2] sm:$0x1]
        %v298 = vlaneseq
        %v299 = vshrl.u32 %v298, 7
        %v300 = vsub.s32 0, %v299
        %v301 = vrot.slane %v296, %v300
        %v303 = vadd.f32 %v295, %v301
        %v304 = vld [vmem:[#allocation5] sm:$0xff]
        %v305 = vld [vmem:[#allocation5 + $0x8] sm:$0xff]
        %v306 = vld [vmem:[#allocation5 + $0x10] sm:$0xff]
        %v307 = vld [vmem:[#allocation5 + $0x18] sm:$0xff]
        %v308 = vld [vmem:[%s4] sm:$0x1]
        %v310 = vlaneseq
        %v311 = vshrl.u32 %v310, 7
        %v312 = vsub.s32 0, %v311
        %v313 = vrot.slane %v308, %v312
        %v316 = vsel %vm273, %v303, 0
        %318 = vmatprep.subr.mxu0 0.0
        %319 = vmatpush1.msra.mxu0 0.0
        %320 = vmatprep.subr.mxu0 0.0
        %321 = vmatpush1.msra.mxu0 0.0
        %322 = vmatprep.subr.mxu0 0.0
        %323 = vmatpush1.msra.mxu0 0.0
        %324 = vmatprep.subr.mxu0 0.0
        %325 = vmatpush1.msra.mxu0 0.0
        %326 = vmatprep.subr.mxu0 0.0
        %327 = vmatpush1.msra.mxu0 0.0
        %328 = vmatprep.subr.mxu0 0.0
        %329 = vmatpush1.msra.mxu0 0.0
        %330 = vmatprep.subr.mxu0 0.0
        %331 = vmatpush1.msra.mxu0 0.0
        %332 = vmatprep.subr.mxu0 0.0
        %333 = vmatpush1.msra.mxu0 0.0
        %334 = vmatprep.subr.mxu0 0.0
        %335 = vmatpush1.msra.mxu0 0.0
        %336 = vmatprep.subr.mxu0 0.0
        %337 = vmatpush1.msra.mxu0 0.0
        %338 = vmatprep.subr.mxu0 0.0
        %339 = vmatpush1.msra.mxu0 0.0
        %340 = vmatprep.subr.mxu0 0.0
        %341 = vmatpush1.msra.mxu0 0.0
        %342 = vmatprep.subr.mxu0 0.0
        %343 = vmatpush1.msra.mxu0 %v307
        %344 = vmatprep.subr.mxu0 0.0
        %345 = vmatpush1.msra.mxu0 %v306
        %346 = vmatprep.subr.mxu0 0.0
        %347 = vmatpush1.msra.mxu0 %v305
        %348 = vmatprep.subr.mxu0 0.0
        %349 = vmatpush1.msra.mxu0 %v304
        %350 = vmatprep.subr.mxu0 0.0
        %351 = vmatpush2.msra.mxu0 0.0
        %352 = vmatprep.subr.mxu0 0.0
        %353 = vmatpush2.msra.mxu0 0.0
        %354 = vmatprep.subr.mxu0 0.0
        %355 = vmatpush2.msra.mxu0 0.0
        %356 = vmatprep.subr.mxu0 0.0
        %357 = vmatpush2.msra.mxu0 0.0
        %358 = vmatprep.subr.mxu0 0.0
        %359 = vmatpush2.msra.mxu0 0.0
        %360 = vmatprep.subr.mxu0 0.0
        %361 = vmatpush2.msra.mxu0 0.0
        %362 = vmatprep.subr.mxu0 0.0
        %363 = vmatpush2.msra.mxu0 0.0
        %364 = vmatprep.subr.mxu0 0.0
        %365 = vmatpush2.msra.mxu0 0.0
        %366 = vmatprep.subr.mxu0 0.0
        %367 = vmatpush2.msra.mxu0 0.0
        %368 = vmatprep.subr.mxu0 0.0
        %369 = vmatpush2.msra.mxu0 0.0
        %370 = vmatprep.subr.mxu0 0.0
        %371 = vmatpush2.msra.mxu0 0.0
        %372 = vmatprep.subr.mxu0 0.0
        %373 = vmatpush2.msra.mxu0 0.0
        %374 = vmatprep.subr.mxu0 0.0
        %375 = vmatpush2.msra.mxu0 0.0
        %376 = vmatprep.subr.mxu0 0.0
        %377 = vmatpush2.msra.mxu0 0.0
        %378 = vmatprep.subr.mxu0 0.0
        %379 = vmatpush2.msra.mxu0 0.0
        %380 = vmatprep.subr.mxu0 0.0
        %381 = vmatpush2.msra.mxu0 0.0
        %382 = vmatprep.mubr.f32.mxu0 0.0
        %383 = vmatmul.mubr.f32.gmra.mxu0 %v316
        %v384 = vpop.f32.mrf.mxu0
        %v385 = vadd.f32 %v313, %v384
        %v386 = vpop.f32.mrf.mxu0
        %387 = vdwg.mxu0
        %vm388 = vcmask 785408
        %389 = vst.msk [vmem:[%s271] sm:$0xff] %vm388, %v385
        %s390 = sand.u32 %s157, 1
        %s391 = scalar_lea.sflag [#allocation4], %s390
        %s392 = sand.u32 %s157, 1
        %s393 = smul.addr %s392, 8
        %s394 = scalar_lea.vmem [#allocation7], %s393
        // Predicated region
        $region49: #{tpu_custom_call.1} parent=39 // pred_check
          %p395 = pneg %p167
        $region50: #{tpu_custom_call.1} parent=39 // pred_check_branch
          %397 = sbr.rel (%p395) target = $region52
        $region51: #{tpu_custom_call.1} parent=39 // pred_region
          %s399 = ssub.s32 128, 128
          %400 = vsyncadd %s391, %s399
          %s401 = sadd.s32 %s28, %s27
          %s402 = smul.addr %s401, 128
          %s403 = scalar_lea.hbm %s5, %s402
          %s405 = sshll.u32 %s394, 4
          %s406 = int_to_ptr.vmem [resolvable:$true] %s405
          %408 = dma.vmem_to_hbm [thread:$0]  %s406, 128, %s403, %s391
        $region52: #{tpu_custom_call.1} parent=39 // pred_fallthru
          _
      $region40: #{tpu_custom_call.1} parent=5 // pred_fallthru
        _
      %p409 = scmp.le.s32.totalorder 2, %s18
      // Predicated region
      $region53: #{tpu_custom_call.1} parent=5 // pred_check
        %p410 = pneg %p409
      $region54: #{tpu_custom_call.1} parent=5 // pred_check_branch
        %412 = sbr.rel (%p410) target = $region56
      $region55: #{tpu_custom_call.1} parent=5 // pred_region
        %s413 = ssub.s32 %s18, 2
        // Predicated region
        $region57: #{tpu_custom_call.1} parent=55 // pred_check
          %p414 = pneg %p173
        $region58: #{tpu_custom_call.1} parent=55 // pred_check_branch
          %416 = sbr.rel (%p414) target = $region60
        $region59: #{tpu_custom_call.1} parent=55 // pred_region
          %s417 = sand.u32 %s158, 1
          %s418 = scalar_lea.sflag [#allocation4], %s417
          %s419 = sand.u32 %s158, 1
          %s420 = smul.addr %s419, 8
          %s421 = scalar_lea.vmem [#allocation7], %s420
          %422 = dma.done %s418, 128
        $region60: #{tpu_custom_call.1} parent=55 // pred_fallthru
          _
      $region56: #{tpu_custom_call.1} parent=5 // pred_fallthru
        _
    $region6: #{tpu_custom_call.1} parent=1 // loop_footer
      %s22 = sadd.s32 1, %s18
    $region7: #{tpu_custom_call.1} parent=1 // loop_footer_branch
      %17 = sbr.rel target = $region3
    $region8: #{tpu_custom_call.1} parent=1 // loop_exit
      _
    %423 = vsyncpa [#allocation3], 1
    %s424 = scalar_lea.sflag [#allocation3], 1
    %425 = vsyncpa %s424, 1
    %426 = vsyncpa [#allocation6], 1
    %427 = vsyncpa [#allocation4], 1
    %s428 = scalar_lea.sflag [#allocation4], 1
    %429 = vsyncpa %s428, 1

</llo_original>
